<compile_context>
chip_gen: v6e
topology: v6e:2x2x1
jax: 0.10.0
libtpu: 0.0.40
codegen_flags: <defaults>
</compile_context>

<pallas_src>
import functools

import numpy as np
import jax
import jax.numpy as jnp
from jax.experimental import pallas as pl
from jax.experimental.pallas import tpu as pltpu


_LANES = 128
_SUBLANES = 8
_TARGET_BLOCK_BYTES = 2 * 1024 * 1024      # ~2 MiB per input per pipeline buffer
_SMALL_SAMPLE_BYTES = _TARGET_BLOCK_BYTES // 8   # below this, batch samples/step
_VMEM_LIMIT_BYTES = 32 * 1024 * 1024       # safe on v5e/v6e (128 MiB) and v7x (64 MiB)


def _cdiv(a, b):
    return -(-a // b)


def _round_up(x, m):
    return ((x + m - 1) // m) * m


# ---------------------------------------------------------------------------
# Slab kernel: blocks var/ab = (b_tile, r_tile, 128); out = (b_tile, 1, 128);
# scratch acc = (b_tile, 8, 128) resident across the reduction axis.
# ---------------------------------------------------------------------------
def _sse_slab_kernel(var_ref, ab_ref, out_ref, acc_ref, *,
                     rows_total, n_split, num_r_inner, any_mask):
    o = pl.program_id(0)
    k = pl.program_id(1)
    b_tile, r_tile, _ = var_ref.shape
    groups = r_tile // _SUBLANES

    @pl.when(k == 0)
    def _():
        acc_ref[...] = jnp.zeros_like(acc_ref)

    def diff():
        return var_ref[...].astype(jnp.float32) - ab_ref[...].astype(jnp.float32)

    def accumulate(d):
        d2 = d * d
        # Relayout-free sublane-group fold: (b, r_tile, 128) -> (b, 8, 128).
        acc_ref[...] += jnp.sum(
            d2.reshape(b_tile, groups, _SUBLANES, _LANES), axis=1)

    if n_split > 1:
        row_block = (o % n_split) * num_r_inner + k
    else:
        row_block = k
    row_start = row_block * r_tile

    if any_mask:
        needs_mask = row_start + r_tile > rows_total

        @pl.when(needs_mask)
        def _():
            row = (jax.lax.broadcasted_iota(
                jnp.int32, (b_tile, r_tile, _LANES), 1) + row_start)
            accumulate(jnp.where(row < rows_total, diff(), 0.0))

        @pl.when(jnp.logical_not(needs_mask))
        def _():
            accumulate(diff())
    else:
        accumulate(diff())

    @pl.when(k == pl.num_programs(1) - 1)
    def _():
        # Per-sample sublane fold -> lane-dense (b_tile, 1, 128) output.
        out_ref[...] = jnp.sum(acc_ref[...], axis=1, keepdims=True)


def _sse_slab(var, ab, B, F, itemsize):
    R = F // _LANES
    sub_mult = max(_SUBLANES, 32 // itemsize)          # 8 f32, 16 bf16, 32 int8

    v3 = var.reshape(B, R, _LANES)
    a3 = ab.reshape(B, R, _LANES)

    # Balanced, dtype-aware row tiling (~2 MiB per input per buffer).
    max_rows = max(sub_mult,
                   (_TARGET_BLOCK_BYTES // (_LANES * itemsize)) // sub_mult * sub_mult)
    num_r_target = _cdiv(R, max_rows)
    r_tile = _round_up(_cdiv(R, num_r_target), sub_mult)
    num_r_total = _cdiv(R, r_tile)

    if R * _LANES * itemsize <= _SMALL_SAMPLE_BYTES and B > 1:
        # Small samples: pack several samples per grid step.
        r_tile = _round_up(R, sub_mult)
        num_r_total = 1
        cap = _TARGET_BLOCK_BYTES // (r_tile * _LANES * itemsize)   # >= 8
        b_tile = B if B <= cap else (cap // _SUBLANES) * _SUBLANES
        n_split = 1
    else:
        b_tile = 1
        # Keep both v7x TensorCores busy when there is only one sample.
        n_split = 2 if (B == 1 and num_r_total >= 2) else 1

    num_r_inner = _cdiv(num_r_total, n_split)
    num_b_blocks = _cdiv(B, b_tile)
    num_outer = num_b_blocks * n_split
    out_rows = B * n_split
    any_mask = (n_split * num_r_inner * r_tile) > R

    if n_split == 1:
        in_map = lambda o, k: (o, k, 0)
    else:
        last_rb = num_r_total - 1

        def in_map(o, k):
            rb = (o % n_split) * num_r_inner + k
            return (o // n_split, jnp.minimum(rb, last_rb), 0)

    kernel = functools.partial(
        _sse_slab_kernel, rows_total=R, n_split=n_split,
        num_r_inner=num_r_inner, any_mask=any_mask)

    partials = pl.pallas_call(
        kernel,
        out_shape=jax.ShapeDtypeStruct((out_rows, 1, _LANES), jnp.float32),
        grid_spec=pltpu.PrefetchScalarGridSpec(
            num_scalar_prefetch=0,
            grid=(num_outer, num_r_inner),
            in_specs=[
                pl.BlockSpec((b_tile, r_tile, _LANES), in_map),
                pl.BlockSpec((b_tile, r_tile, _LANES), in_map),
            ],
            out_specs=pl.BlockSpec((b_tile, 1, _LANES), lambda o, k: (o, 0, 0)),
            scratch_shapes=[pltpu.VMEM((b_tile, _SUBLANES, _LANES), jnp.float32)],
        ),
        compiler_params=pltpu.CompilerParams(
            dimension_semantics=("parallel", "arbitrary"),
            vmem_limit_bytes=_VMEM_LIMIT_BYTES,
        ),
        cost_estimate=pl.CostEstimate(
            flops=3 * B * F, transcendentals=0,
            bytes_accessed=2 * B * F * itemsize + out_rows * _LANES * 4),
    )(v3, a3)

    # Tiny final lane reduce (and n_split fold) outside the kernel.
    return partials.reshape(B, -1).sum(axis=1)


# ---------------------------------------------------------------------------
# Flat fallback (F % 128 != 0): blocks (b_blk, tile); out (b_blk, 128).
# Lane-aligned chunk accumulation; tail masked only in the last grid block.
# ---------------------------------------------------------------------------
def _sse_flat_kernel(var_ref, ab_ref, out_ref, *, f_total, any_mask):
    k = pl.program_id(1)
    b_blk, tile = var_ref.shape
    n_chunks = tile // _LANES

    @pl.when(k == 0)
    def _():
        out_ref[...] = jnp.zeros_like(out_ref)

    def compute(masked):
        if masked:
            base_col = (jax.lax.broadcasted_iota(jnp.int32, (b_blk, _LANES), 1)
                        + k * tile)

        def body(m, acc):
            off = pl.multiple_of(m * _LANES, _LANES)
            v = var_ref[:, pl.ds(off, _LANES)].astype(jnp.float32)
            a = ab_ref[:, pl.ds(off, _LANES)].astype(jnp.float32)
            d = v - a
            if masked:
                d = jnp.where(base_col + off < f_total, d, 0.0)
            return acc + d * d

        acc = jax.lax.fori_loop(0, n_chunks, body,
                                jnp.zeros((b_blk, _LANES), jnp.float32),
                                unroll=min(8, n_chunks))
        out_ref[...] += acc

    if any_mask:
        is_last = k == pl.num_programs(1) - 1

        @pl.when(is_last)
        def _():
            compute(True)

        @pl.when(jnp.logical_not(is_last))
        def _():
            compute(False)
    else:
        compute(False)


def _sse_flat(var, ab, B, F, itemsize):
    v2 = var.reshape(B, F)
    a2 = ab.reshape(B, F)

    b_blk = B if B <= 512 else 512
    tile = (_TARGET_BLOCK_BYTES // (b_blk * itemsize)) // _LANES * _LANES
    tile = max(_LANES, min(tile, _round_up(F, _LANES)))
    num_f = _cdiv(F, tile)
    num_b = _cdiv(B, b_blk)
    any_mask = (num_f * tile) > F

    kernel = functools.partial(_sse_flat_kernel, f_total=F, any_mask=any_mask)

    partials = pl.pallas_call(
        kernel,
        out_shape=jax.ShapeDtypeStruct((B, _LANES), jnp.float32),
        grid_spec=pltpu.PrefetchScalarGridSpec(
            num_scalar_prefetch=0,
            grid=(num_b, num_f),
            in_specs=[
                pl.BlockSpec((b_blk, tile), lambda b, k: (b, k)),
                pl.BlockSpec((b_blk, tile), lambda b, k: (b, k)),
            ],
            out_specs=pl.BlockSpec((b_blk, _LANES), lambda b, k: (b, 0)),
        ),
        compiler_params=pltpu.CompilerParams(
            dimension_semantics=("parallel", "arbitrary"),
            vmem_limit_bytes=_VMEM_LIMIT_BYTES,
        ),
        cost_estimate=pl.CostEstimate(
            flops=3 * B * F, transcendentals=0,
            bytes_accessed=2 * B * F * itemsize + B * _LANES * 4),
    )(v2, a2)
    return partials.sum(axis=1)


def per_sample_sse(var, ab):
    """Equivalent of Loss.forward: per-sample sum((var_i - ab_i)^2), shape [B]."""
    assert var.shape == ab.shape
    B = int(var.shape[0])
    F = int(np.prod(var.shape[1:]))
    itemsize = int(np.dtype(var.dtype).itemsize)

    if F % _LANES == 0:
        return _sse_slab(var, ab, B, F, itemsize)
    return _sse_flat(var, ab, B, F, itemsize)


if __name__ == "__main__":
    key = jax.random.PRNGKey(0)
    k1, k2 = jax.random.split(key)

    # Main demo: small NCHW shape -> slab path, several samples per grid step.
    B, C, H, W = 2, 4, 16, 16
    var = jax.random.normal(k1, (B, C, H, W), dtype=jnp.float32)
    ab = jax.random.normal(k2, (B, C, H, W), dtype=jnp.float32)
    out = jax.block_until_ready(per_sample_sse(var, ab))
    ref = jnp.sum((var - ab) ** 2, axis=(1, 2, 3))
    np.testing.assert_allclose(np.asarray(out), np.asarray(ref), rtol=1e-5, atol=1e-4)

    # Slab path with a ragged (non-multiple-of-8) row count, batched samples.
    v2 = jax.random.normal(k1, (2, 3, 10, 64), dtype=jnp.float32)    # F=1920, R=15
    a2 = jax.random.normal(k2, (2, 3, 10, 64), dtype=jnp.float32)
    out2 = jax.block_until_ready(per_sample_sse(v2, a2))
    ref2 = jnp.sum((v2 - a2) ** 2, axis=(1, 2, 3))
    np.testing.assert_allclose(np.asarray(out2), np.asarray(ref2), rtol=1e-5, atol=1e-4)

    # B == 1: parallel row-split path (2 accumulator chains) + masked last block.
    v3 = jax.random.normal(k1, (1, 4100, 1, 128), dtype=jnp.float32)  # R=4100
    a3 = jax.random.normal(k2, (1, 4100, 1, 128), dtype=jnp.float32)
    out3 = jax.block_until_ready(per_sample_sse(v3, a3))
    ref3 = jnp.sum((v3 - a3) ** 2, axis=(1, 2, 3))
    np.testing.assert_allclose(np.asarray(out3), np.asarray(ref3), rtol=1e-4, atol=1e-2)

    # F not a multiple of 128: flat fallback with in-kernel tail masking.
    v4 = jax.random.normal(k1, (2, 3, 5, 7), dtype=jnp.float32)       # F=105
    a4 = jax.random.normal(k2, (2, 3, 5, 7), dtype=jnp.float32)
    out4 = jax.block_until_ready(per_sample_sse(v4, a4))
    ref4 = jnp.sum((v4 - a4) ** 2, axis=(1, 2, 3))
    np.testing.assert_allclose(np.asarray(out4), np.asarray(ref4), rtol=1e-5, atol=1e-4)

    print("KERNEL_OK")
</pallas_src>

<mosaic_0001>
module attributes {stable_mosaic.version = 11 : i64} {
  func.func @_sse_slab_kernel(%arg0: i32, %arg1: i32, %arg2: memref<2x8x128xf32, #tpu.memory_space<vmem>>, %arg3: memref<2x8x128xf32, #tpu.memory_space<vmem>>, %arg4: memref<2x1x128xf32, #tpu.memory_space<vmem>>, %arg5: memref<2x8x128xf32, #tpu.memory_space<vmem>>) attributes {dimension_semantics = [#tpu.dimension_semantics<parallel>, #tpu.dimension_semantics<arbitrary>], iteration_bounds = array<i64: 1, 1>, scalar_prefetch = 0 : i64, scratch_operands = 1 : i64, tpu.core_type = #tpu.core_type<tc>, window_params = [{transform_indices = @transform_0, window_bounds = array<i64: 2, 8, 128>}, {transform_indices = @transform_1, window_bounds = array<i64: 2, 8, 128>}, {transform_indices = @transform_2, window_bounds = array<i64: 2, 1, 128>}]} {
    %c0_i32 = arith.constant 0 : i32
    %0 = arith.cmpi eq, %arg1, %c0_i32 : i32
    %1 = arith.extui %0 : i1 to i32
    %c0_i32_0 = arith.constant 0 : i32
    %2 = arith.cmpi ne, %1, %c0_i32_0 : i32
    scf.if %2 {
      %cst_14 = arith.constant 0.000000e+00 : f32
      %15 = vector.broadcast %cst_14 : f32 to vector<2x8x128xf32>
      %c0_15 = arith.constant 0 : index
      %c0_16 = arith.constant 0 : index
      %c0_17 = arith.constant 0 : index
      %16 = vector.load %arg5[%c0_15, %c0_16, %c0_17] : memref<2x8x128xf32, #tpu.memory_space<vmem>>, vector<2x8x128xf32>
      tpu.vector_store %arg5[%c0_15, %c0_16, %c0_17], %15 {strides = array<i32>} : memref<2x8x128xf32, #tpu.memory_space<vmem>>, vector<2x8x128xf32>,
    } else {
    }
    %c0 = arith.constant 0 : index
    %c0_1 = arith.constant 0 : index
    %c0_2 = arith.constant 0 : index
    %3 = vector.load %arg2[%c0, %c0_1, %c0_2] : memref<2x8x128xf32, #tpu.memory_space<vmem>>, vector<2x8x128xf32>
    %c0_3 = arith.constant 0 : index
    %c0_4 = arith.constant 0 : index
    %c0_5 = arith.constant 0 : index
    %4 = vector.load %arg3[%c0_3, %c0_4, %c0_5] : memref<2x8x128xf32, #tpu.memory_space<vmem>>, vector<2x8x128xf32>
    %5 = arith.subf %3, %4 : vector<2x8x128xf32>
    %6 = arith.mulf %5, %5 : vector<2x8x128xf32>
    %c0_6 = arith.constant 0 : index
    %c0_7 = arith.constant 0 : index
    %c0_8 = arith.constant 0 : index
    %7 = vector.load %arg5[%c0_6, %c0_7, %c0_8] : memref<2x8x128xf32, #tpu.memory_space<vmem>>, vector<2x8x128xf32>
    %8 = vector.shape_cast %6 : vector<2x8x128xf32> to vector<2x1x8x128xf32>
    %cst = arith.constant dense<0.000000e+00> : vector<2x8x128xf32>
    %9 = vector.multi_reduction <add>, %8, %cst [1] : vector<2x1x8x128xf32> to vector<2x8x128xf32>
    %10 = arith.addf %7, %9 : vector<2x8x128xf32>
    %c0_9 = arith.constant 0 : index
    %c0_10 = arith.constant 0 : index
    %c0_11 = arith.constant 0 : index
    %11 = vector.load %arg5[%c0_9, %c0_10, %c0_11] : memref<2x8x128xf32, #tpu.memory_space<vmem>>, vector<2x8x128xf32>
    tpu.vector_store %arg5[%c0_9, %c0_10, %c0_11], %10 {strides = array<i32>} : memref<2x8x128xf32, #tpu.memory_space<vmem>>, vector<2x8x128xf32>,
    %c0_i32_12 = arith.constant 0 : i32
    %12 = arith.cmpi eq, %arg1, %c0_i32_12 : i32
    %13 = arith.extui %12 : i1 to i32
    %c0_i32_13 = arith.constant 0 : i32
    %14 = arith.cmpi ne, %13, %c0_i32_13 : i32
    scf.if %14 {
      %c0_14 = arith.constant 0 : index
      %c0_15 = arith.constant 0 : index
      %c0_16 = arith.constant 0 : index
      %15 = vector.load %arg5[%c0_14, %c0_15, %c0_16] : memref<2x8x128xf32, #tpu.memory_space<vmem>>, vector<2x8x128xf32>
      %cst_17 = arith.constant dense<0.000000e+00> : vector<2x128xf32>
      %16 = vector.multi_reduction <add>, %15, %cst_17 [1] : vector<2x8x128xf32> to vector<2x128xf32>
      %17 = vector.shape_cast %16 : vector<2x128xf32> to vector<2x1x128xf32>
      %c0_18 = arith.constant 0 : index
      %c0_19 = arith.constant 0 : index
      %c0_20 = arith.constant 0 : index
      %18 = vector.load %arg4[%c0_18, %c0_19, %c0_20] : memref<2x1x128xf32, #tpu.memory_space<vmem>>, vector<2x1x128xf32>
      tpu.vector_store %arg4[%c0_18, %c0_19, %c0_20], %17 {strides = array<i32>} : memref<2x1x128xf32, #tpu.memory_space<vmem>>, vector<2x1x128xf32>,
    } else {
    }
    return
  }
  func.func @transform_0(%arg0: i32, %arg1: i32) -> (i32, i32, i32) {
    %c0_i32 = arith.constant 0 : i32
    %c0_i32_0 = arith.constant 0 : i32
    return %arg0, %arg1, %c0_i32 : i32, i32, i32
  }
  func.func @transform_1(%arg0: i32, %arg1: i32) -> (i32, i32, i32) {
    %c0_i32 = arith.constant 0 : i32
    %c0_i32_0 = arith.constant 0 : i32
    return %arg0, %arg1, %c0_i32 : i32, i32, i32
  }
  func.func @transform_2(%arg0: i32, %arg1: i32) -> (i32, i32, i32) {
    %c0_i32 = arith.constant 0 : i32
    %c0_i32_0 = arith.constant 0 : i32
    %c0_i32_1 = arith.constant 0 : i32
    return %arg0, %c0_i32, %c0_i32_0 : i32, i32, i32
  }
}

</mosaic_0001>

<llo_original>
// kernel: tpu_custom_call.1
$region0: #{tpu_custom_call.1}
  #allocation0 [shape = 'u32[]', space=smem, size = 0x4, offset = 0x4, fixed_abs, tag = 'smem constant byte address 0x4 - core index']
  #allocation1 [shape = 'u32[144,128]{1,0:T(1,128)}', space=vmem, size = 0x12000, scoped, tag = 'internal scratch']
  #allocation2 [shape = 'f32[2,8,128]{2,1,0:T(8,128)}', space=vmem, size = 0x2000, scoped, tag = 'scratch operand']
  %s0 = inlined_call_operand.hbm [shape: f32[2,8,128], index: 0, kind: input, shape index: {}]
  %s1 = inlined_call_operand.hbm [shape: f32[2,8,128], index: 1, kind: input, shape index: {}]
  %s2 = inlined_call_operand.hbm [shape: f32[2,1,128], index: 2, kind: output, shape index: {}]
  %s3 = sld [smem:[#allocation0]]
  $region34: #{tpu_custom_call.1} parent=0
    _
  %s5 = ssub.s32 1, %s3
  %s6 = scalar_select 0, %s5, %s3
  $region1: #{tpu_custom_call.1} parent=0
    #allocation3 [shape = 'u8[8192]{0}', space=vmem, size = 0x2000, scoped, tag = 'input window, operand 0, single buffered']
    #allocation4 [shape = 's32[1]{0}', space=sflag, size = 0x4, scoped, tag = 'scoped memory for tpu_custom_call.1']
    #allocation5 [shape = 's32[1]{0}', space=sflag, size = 0x4, scoped, tag = 'scoped memory for tpu_custom_call.1']
    #allocation6 [shape = 'u8[8192]{0}', space=vmem, size = 0x2000, scoped, tag = 'input window, operand 1, single buffered']
    #allocation7 [shape = 's32[1]{0}', space=sflag, size = 0x4, scoped, tag = 'scoped memory for tpu_custom_call.1']
    #allocation8 [shape = 'u8[1024]{0}', space=vmem, size = 0x400, scoped, tag = 'output window, operand 0, single buffered']
    %7 = vsyncpa [#allocation4], 0
    %8 = vsyncpa [#allocation7], 0
    %9 = vsyncpa [#allocation5], 0
    // Predicated region
    $region2: #{tpu_custom_call.1} parent=1 // pred_check
      _
    $region3: #{tpu_custom_call.1} parent=1 // pred_check_branch
      %11 = sbr.rel (0) target = $region5
    $region4: #{tpu_custom_call.1} parent=1 // pred_region
      %s13 = ssub.s32 256, 256
      %14 = vsyncadd [#allocation4], %s13
      %s15 = sshll.u32 [#allocation3], 4
      %s16 = int_to_ptr.vmem [resolvable:$true] %s15
      %21 = dma.hbm_to_vmem [thread:$0]  %s0, 256, %s16, [#allocation4], 128, 128, 8
    $region5: #{tpu_custom_call.1} parent=1 // pred_fallthru
      _
    // Predicated region
    $region6: #{tpu_custom_call.1} parent=1 // pred_check
      _
    $region7: #{tpu_custom_call.1} parent=1 // pred_check_branch
      %23 = sbr.rel (0) target = $region9
    $region8: #{tpu_custom_call.1} parent=1 // pred_region
      %s25 = ssub.s32 256, 256
      %26 = vsyncadd [#allocation7], %s25
      %s27 = sshll.u32 [#allocation6], 4
      %s28 = int_to_ptr.vmem [resolvable:$true] %s27
      %33 = dma.hbm_to_vmem [thread:$0]  %s1, 256, %s28, [#allocation7], 128, 128, 8
    $region9: #{tpu_custom_call.1} parent=1 // pred_fallthru
      _
    // Predicated region
    $region10: #{tpu_custom_call.1} parent=1 // pred_check
      _
    $region11: #{tpu_custom_call.1} parent=1 // pred_check_branch
      %35 = sbr.rel (0) target = $region13
    $region12: #{tpu_custom_call.1} parent=1 // pred_region
      %36 = dma.done [#allocation4], 256
    $region13: #{tpu_custom_call.1} parent=1 // pred_fallthru
      _
    // Predicated region
    $region14: #{tpu_custom_call.1} parent=1 // pred_check
      _
    $region15: #{tpu_custom_call.1} parent=1 // pred_check_branch
      %38 = sbr.rel (0) target = $region17
    $region16: #{tpu_custom_call.1} parent=1 // pred_region
      %39 = dma.done [#allocation7], 256
    $region17: #{tpu_custom_call.1} parent=1 // pred_fallthru
      _
    %p40 = scmp.eq.s32.totalorder 0, 0
    // Predicated region
    $region18: #{tpu_custom_call.1} parent=1 // pred_check
      %p41 = pneg %p40
    $region19: #{tpu_custom_call.1} parent=1 // pred_check_branch
      %43 = sbr.rel (%p41) target = $region21
    $region20: #{tpu_custom_call.1} parent=1 // pred_region
      %44 = vst [vmem:[#allocation2] sm:$0xff] 0.0
      %45 = vst [vmem:[#allocation2 + $0x8] sm:$0xff] 0.0
    $region21: #{tpu_custom_call.1} parent=1 // pred_fallthru
      _
    %v46 = vld [vmem:[#allocation3] sm:$0xff]
    %v47 = vld [vmem:[#allocation3 + $0x8] sm:$0xff]
    %v48 = vld [vmem:[#allocation6] sm:$0xff]
    %v49 = vld [vmem:[#allocation6 + $0x8] sm:$0xff]
    %v50 = vsub.f32 %v46, %v48
    %v51 = vsub.f32 %v47, %v49
    %v52 = vmul.f32 %v50, %v50
    %v53 = vmul.f32 %v51, %v51
    %v54 = vld [vmem:[#allocation2] sm:$0xff]
    %v55 = vld [vmem:[#allocation2 + $0x8] sm:$0xff]
    %v56 = vadd.f32 %v52, 0.0
    %v57 = vadd.f32 %v53, 0.0
    %v58 = vadd.f32 %v54, %v56
    %v59 = vadd.f32 %v55, %v57
    %60 = vst [vmem:[#allocation2] sm:$0xff] %v58
    %61 = vst [vmem:[#allocation2 + $0x8] sm:$0xff] %v59
    // Predicated region
    $region22: #{tpu_custom_call.1} parent=1 // pred_check
      %p62 = pneg %p40
    $region23: #{tpu_custom_call.1} parent=1 // pred_check_branch
      %64 = sbr.rel (%p62) target = $region25
    $region24: #{tpu_custom_call.1} parent=1 // pred_region
      %v65 = vld [vmem:[#allocation2] sm:$0xff]
      %v66 = vld [vmem:[#allocation2 + $0x8] sm:$0xff]
      %v67 = vrot.slane %v65, 4
      %v68 = vadd.f32 %v65, %v67
      %v69 = vrot.slane %v68, 2
      %v70 = vadd.f32 %v68, %v69
      %v71 = vrot.slane %v70, 1
      %v72 = vadd.f32 %v70, %v71
      %v73 = vrot.slane %v66, 4
      %v74 = vadd.f32 %v66, %v73
      %v75 = vrot.slane %v74, 2
      %v76 = vadd.f32 %v74, %v75
      %v77 = vrot.slane %v76, 1
      %v78 = vadd.f32 %v76, %v77
      %79 = vst [vmem:[#allocation8] sm:$0x1] %v72
      %80 = vst [vmem:[#allocation8 + $0x1] sm:$0x1] %v78
    $region25: #{tpu_custom_call.1} parent=1 // pred_fallthru
      _
    // Predicated region
    $region26: #{tpu_custom_call.1} parent=1 // pred_check
      _
    $region27: #{tpu_custom_call.1} parent=1 // pred_check_branch
      %82 = sbr.rel (0) target = $region29
    $region28: #{tpu_custom_call.1} parent=1 // pred_region
      %s84 = ssub.s32 32, 32
      %85 = vsyncadd [#allocation5], %s84
      %s86 = sshll.u32 [#allocation8], 4
      %s87 = int_to_ptr.vmem [resolvable:$true] %s86
      %92 = dma.vmem_to_hbm [thread:$0]  %s87, 32, %s2, [#allocation5], 16, 16, 1
    $region29: #{tpu_custom_call.1} parent=1 // pred_fallthru
      _
    // Predicated region
    $region30: #{tpu_custom_call.1} parent=1 // pred_check
      _
    $region31: #{tpu_custom_call.1} parent=1 // pred_check_branch
      %94 = sbr.rel (0) target = $region33
    $region32: #{tpu_custom_call.1} parent=1 // pred_region
      %95 = dma.done [#allocation5], 32
    $region33: #{tpu_custom_call.1} parent=1 // pred_fallthru
      _
    %96 = vsyncpa [#allocation4], 1
    %97 = vsyncpa [#allocation7], 1
    %98 = vsyncpa [#allocation5], 1

</llo_original>
